<compile_context>
chip_gen: v7x
topology: tpu7x:2x2x1
jax: 0.10.0
libtpu: 0.0.40
codegen_flags: <defaults>
</compile_context>

<pallas_src>
import functools
import math

import jax
import jax.numpy as jnp
from jax.experimental import pallas as pl
from jax.experimental.pallas import tpu as pltpu

_NCORES = 2     # split row-blocks across (up to) 2 TensorCores (v7x megacore)
_LANES = 128


def _jsd_kernel(p_ref, q_ref, out_ref, acc_ref, *, rows, tm, steps):
    """Per-core accumulation of sum p*log(2p/(p+q)) + q*log(2q/(p+q))."""
    c = pl.program_id(0)
    s = pl.program_id(1)

    @pl.when(s == 0)
    def _():
        acc_ref[...] = jnp.zeros_like(acc_ref)

    # Unclamped flat block id -> starting row of this tile.  Rows >= `rows`
    # (core-split overhang blocks and the garbage tail of a partial last tile)
    # are masked out below with a select, so NaNs from garbage never propagate.
    b = c * steps + s
    row0 = b * tm

    p = p_ref[...].astype(jnp.float32)
    q = q_ref[...].astype(jnp.float32)

    # 2 logs + 1 divide per element (instead of 3 logs):
    #   p*(log p - log m) + q*(log q - log m)
    # = p*log(2p/(p+q)) + q*log(2q/(p+q)),  and 2q/(p+q) = 2 - 2p/(p+q).
    t = (2.0 * p) / (p + q)
    term = p * jnp.log(t) + q * jnp.log(2.0 - t)

    row_ids = row0 + jax.lax.broadcasted_iota(jnp.int32, term.shape, 0)
    term = jnp.where(row_ids < rows, term, 0.0)

    acc_ref[...] += term            # block-shaped accumulator: pure VALU adds

    @pl.when(s == steps - 1)
    def _():
        total = jnp.sum(acc_ref[...])      # single cross-lane reduce per core
        out_ref[...] = jnp.broadcast_to(total, out_ref.shape).astype(jnp.float32)


def jsd(p, q, *, block_elems=512 * 1024):
    """Jensen-Shannon divergence matching JSD.forward (batchmean, log_target)."""
    assert p.shape == q.shape, "p and q must have the same shape"
    n_rows_orig = math.prod(p.shape[:-1]) if p.ndim > 1 else 1  # batchmean denom

    total_elems = p.size
    flat_p = p.reshape(-1)
    flat_q = q.reshape(-1)

    # Pick the widest lane-dense width that divides the element count so the
    # reshape is a free bitcast (the reduction is over all elements, so layout
    # is free).  Fall back to a tiny 1.0 pad (contributes exactly 0) otherwise.
    lane_w = None
    for w in (2048, 1024, 512, 256, 128):
        if total_elems % w == 0:
            lane_w = w
            break
    if lane_w is None:
        lane_w = _LANES
        pad = (-total_elems) % lane_w
        flat_p = jnp.pad(flat_p, (0, pad), constant_values=1.0)
        flat_q = jnp.pad(flat_q, (0, pad), constant_values=1.0)

    rows = flat_p.shape[0] // lane_w
    p2 = flat_p.reshape(rows, lane_w)
    q2 = flat_q.reshape(rows, lane_w)

    # Large tiles (~2 MiB f32 per input block).  Live VMEM ~= 2 inputs x 2
    # pipeline buffers x block + 1 accumulator block ~= 10 MiB, safe on
    # v5e/v6e/v7x (v7x has only 64 MiB physical per core).
    max_tm = max(8, (block_elems // lane_w) // 8 * 8)
    tm = rows if rows <= max_tm else max_tm
    nblocks = pl.cdiv(rows, tm)
    steps = pl.cdiv(nblocks, _NCORES)
    grid = (_NCORES, steps)

    def in_map(c, s):
        # Clamp overhang blocks (from the core split) to the last real block;
        # the kernel masks their contribution to zero.
        b = jnp.minimum(c * steps + s, nblocks - 1)
        return (b, 0)

    out = pl.pallas_call(
        functools.partial(_jsd_kernel, rows=rows, tm=tm, steps=steps),
        out_shape=jax.ShapeDtypeStruct((1, _NCORES * _LANES), jnp.float32),
        grid_spec=pltpu.PrefetchScalarGridSpec(
            num_scalar_prefetch=0,
            grid=grid,
            in_specs=[
                pl.BlockSpec((tm, lane_w), in_map),
                pl.BlockSpec((tm, lane_w), in_map),
            ],
            out_specs=pl.BlockSpec((1, _LANES), lambda c, s: (0, c)),
            scratch_shapes=[pltpu.VMEM((tm, lane_w), jnp.float32)],
        ),
        compiler_params=pltpu.CompilerParams(
            dimension_semantics=("parallel", "arbitrary"),
            vmem_limit_bytes=48 * 1024 * 1024,
        ),
    )(p2, q2)

    per_core = out.reshape(_NCORES, _LANES)[:, 0]      # lane 0 of each core block
    return 0.5 * jnp.sum(per_core) / jnp.float32(n_rows_orig)


def _jsd_reference(p, q):
    """Pure-JAX reference mirroring the PyTorch module exactly."""
    C = p.shape[-1]
    p2 = p.reshape(-1, C)
    q2 = q.reshape(-1, q.shape[-1])
    R = p2.shape[0]
    m = jnp.log(0.5 * (p2 + q2))

    def kl(inp, log_tgt):  # KLDivLoss(reduction='batchmean', log_target=True)
        return jnp.sum(jnp.exp(log_tgt) * (log_tgt - inp)) / R

    return 0.5 * (kl(m, jnp.log(p2)) + kl(m, jnp.log(q2)))


if __name__ == "__main__":
    key = jax.random.PRNGKey(0)
    k1, k2, k3, k4 = jax.random.split(key, 4)

    # Case 1: small classification-style distributions (batch=2, seq=4, classes=32).
    p1 = jax.nn.softmax(jax.random.normal(k1, (2, 4, 32), jnp.float32), axis=-1)
    q1 = jax.nn.softmax(jax.random.normal(k2, (2, 4, 32), jnp.float32), axis=-1)
    out1 = jsd(p1, q1)
    jax.block_until_ready(out1)
    ref1 = _jsd_reference(p1, q1)
    assert jnp.allclose(out1, ref1, rtol=1e-4, atol=1e-6), (out1, ref1)

    # Case 2: class dim not 128-aligned and total size not lane-divisible
    # (exercises the 1.0-pad fallback path).
    p2 = jax.nn.softmax(jax.random.normal(k3, (6, 100), jnp.float32), axis=-1)
    q2 = jax.nn.softmax(jax.random.normal(k4, (6, 100), jnp.float32), axis=-1)
    out2 = jsd(p2, q2)
    jax.block_until_ready(out2)
    ref2 = _jsd_reference(p2, q2)
    assert jnp.allclose(out2, ref2, rtol=1e-4, atol=1e-6), (out2, ref2)

    # Case 3: multi-block grid with a partial last tile and both split "cores"
    # doing real work (small tiles forced via block_elems).
    kp, kq = jax.random.split(jax.random.PRNGKey(1))
    p3 = jax.nn.softmax(jax.random.normal(kp, (100, 512), jnp.float32), axis=-1)
    q3 = jax.nn.softmax(jax.random.normal(kq, (100, 512), jnp.float32), axis=-1)
    out3 = jsd(p3, q3, block_elems=8192)
    jax.block_until_ready(out3)
    ref3 = _jsd_reference(p3, q3)
    assert jnp.allclose(out3, ref3, rtol=1e-4, atol=1e-6), (out3, ref3)

    # Case 4: bf16 inputs streamed directly (no wrapper-side f32 cast).
    p4 = p3.astype(jnp.bfloat16)
    q4 = q3.astype(jnp.bfloat16)
    out4 = jsd(p4, q4)
    jax.block_until_ready(out4)
    ref4 = _jsd_reference(p4.astype(jnp.float32), q4.astype(jnp.float32))
    assert jnp.allclose(out4, ref4, rtol=1e-3, atol=1e-5), (out4, ref4)

    print("KERNEL_OK")
</pallas_src>

<mosaic_0001>
module attributes {stable_mosaic.version = 11 : i64} {
  func.func @_jsd_kernel(%arg0: i32, %arg1: i32, %arg2: memref<1x256xf32, #tpu.memory_space<vmem>>, %arg3: memref<1x256xf32, #tpu.memory_space<vmem>>, %arg4: memref<1x128xf32, #tpu.memory_space<vmem>>, %arg5: memref<1x256xf32, #tpu.memory_space<vmem>>) attributes {dimension_semantics = [#tpu.dimension_semantics<parallel>, #tpu.dimension_semantics<arbitrary>], iteration_bounds = array<i64: 2, 1>, scalar_prefetch = 0 : i64, scratch_operands = 1 : i64, tpu.core_type = #tpu.core_type<tc>, window_params = [{transform_indices = @transform_0, window_bounds = array<i64: 1, 256>}, {transform_indices = @transform_1, window_bounds = array<i64: 1, 256>}, {transform_indices = @transform_2, window_bounds = array<i64: 1, 128>}]} {
    %c0_i32 = arith.constant 0 : i32
    %0 = arith.cmpi eq, %arg1, %c0_i32 : i32
    %1 = arith.extui %0 : i1 to i32
    %c0_i32_0 = arith.constant 0 : i32
    %2 = arith.cmpi ne, %1, %c0_i32_0 : i32
    scf.if %2 {
      %cst_14 = arith.constant 0.000000e+00 : f32
      %32 = vector.broadcast %cst_14 : f32 to vector<1x256xf32>
      %c0_15 = arith.constant 0 : index
      %c0_16 = arith.constant 0 : index
      %33 = vector.load %arg5[%c0_15, %c0_16] : memref<1x256xf32, #tpu.memory_space<vmem>>, vector<1x256xf32>
      tpu.vector_store %arg5[%c0_15, %c0_16], %32 {strides = array<i32>} : memref<1x256xf32, #tpu.memory_space<vmem>>, vector<1x256xf32>,
    } else {
    }
    %c1_i32 = arith.constant 1 : i32
    %3 = arith.muli %arg0, %c1_i32 : i32
    %4 = arith.addi %3, %arg1 : i32
    %c1_i32_1 = arith.constant 1 : i32
    %5 = arith.muli %4, %c1_i32_1 : i32
    %c0 = arith.constant 0 : index
    %c0_2 = arith.constant 0 : index
    %6 = vector.load %arg2[%c0, %c0_2] : memref<1x256xf32, #tpu.memory_space<vmem>>, vector<1x256xf32>
    %c0_3 = arith.constant 0 : index
    %c0_4 = arith.constant 0 : index
    %7 = vector.load %arg3[%c0_3, %c0_4] : memref<1x256xf32, #tpu.memory_space<vmem>>, vector<1x256xf32>
    %cst = arith.constant 2.000000e+00 : f32
    %8 = vector.broadcast %cst : f32 to vector<1x256xf32>
    %9 = arith.mulf %8, %6 : vector<1x256xf32>
    %10 = arith.addf %6, %7 : vector<1x256xf32>
    %11 = arith.divf %9, %10 : vector<1x256xf32>
    %12 = math.log %11 : vector<1x256xf32>
    %13 = arith.mulf %6, %12 : vector<1x256xf32>
    %cst_5 = arith.constant 2.000000e+00 : f32
    %14 = vector.broadcast %cst_5 : f32 to vector<1x256xf32>
    %15 = arith.subf %14, %11 : vector<1x256xf32>
    %16 = math.log %15 : vector<1x256xf32>
    %17 = arith.mulf %7, %16 : vector<1x256xf32>
    %18 = arith.addf %13, %17 : vector<1x256xf32>
    %19 = tpu.iota {dimensions = array<i32: 0>} : vector<1x256xi32>
    %20 = vector.broadcast %5 : i32 to vector<1x256xi32>
    %21 = arith.addi %20, %19 : vector<1x256xi32>
    %c1_i32_6 = arith.constant 1 : i32
    %22 = vector.broadcast %c1_i32_6 : i32 to vector<1x256xi32>
    %23 = arith.cmpi slt, %21, %22 : vector<1x256xi32>
    %cst_7 = arith.constant 0.000000e+00 : f32
    %24 = vector.broadcast %cst_7 : f32 to vector<1x256xf32>
    %25 = arith.select %23, %18, %24 : vector<1x256xi1>, vector<1x256xf32>
    %c0_8 = arith.constant 0 : index
    %c0_9 = arith.constant 0 : index
    %26 = vector.load %arg5[%c0_8, %c0_9] : memref<1x256xf32, #tpu.memory_space<vmem>>, vector<1x256xf32>
    %27 = arith.addf %26, %25 : vector<1x256xf32>
    %c0_10 = arith.constant 0 : index
    %c0_11 = arith.constant 0 : index
    %28 = vector.load %arg5[%c0_10, %c0_11] : memref<1x256xf32, #tpu.memory_space<vmem>>, vector<1x256xf32>
    tpu.vector_store %arg5[%c0_10, %c0_11], %27 {strides = array<i32>} : memref<1x256xf32, #tpu.memory_space<vmem>>, vector<1x256xf32>,
    %c0_i32_12 = arith.constant 0 : i32
    %29 = arith.cmpi eq, %arg1, %c0_i32_12 : i32
    %30 = arith.extui %29 : i1 to i32
    %c0_i32_13 = arith.constant 0 : i32
    %31 = arith.cmpi ne, %30, %c0_i32_13 : i32
    scf.if %31 {
      %c0_14 = arith.constant 0 : index
      %c0_15 = arith.constant 0 : index
      %32 = vector.load %arg5[%c0_14, %c0_15] : memref<1x256xf32, #tpu.memory_space<vmem>>, vector<1x256xf32>
      %33 = vector.shape_cast %32 : vector<1x256xf32> to vector<1x1x256xf32>
      %cst_16 = arith.constant dense<0.000000e+00> : vector<1xf32>
      %34 = vector.multi_reduction <add>, %33, %cst_16 [1, 2] : vector<1x1x256xf32> to vector<1xf32>
      %35 = vector.shape_cast %34 : vector<1xf32> to vector<1x1x1xf32>
      %36 = vector.extract %35[0, 0, 0] : f32 from vector<1x1x1xf32>
      %37 = vector.broadcast %36 : f32 to vector<1x128xf32>
      %c0_17 = arith.constant 0 : index
      %c0_18 = arith.constant 0 : index
      %38 = vector.load %arg4[%c0_17, %c0_18] : memref<1x128xf32, #tpu.memory_space<vmem>>, vector<1x128xf32>
      tpu.vector_store %arg4[%c0_17, %c0_18], %37 {strides = array<i32>} : memref<1x128xf32, #tpu.memory_space<vmem>>, vector<1x128xf32>,
    } else {
    }
    return
  }
  func.func @transform_0(%arg0: i32, %arg1: i32) -> (i32, i32) {
    %c1_i32 = arith.constant 1 : i32
    %0 = arith.muli %arg0, %c1_i32 : i32
    %1 = arith.addi %0, %arg1 : i32
    %c0_i32 = arith.constant 0 : i32
    %2 = arith.minsi %1, %c0_i32 : i32
    %c0_i32_0 = arith.constant 0 : i32
    %c0_i32_1 = arith.constant 0 : i32
    return %2, %c0_i32_0 : i32, i32
  }
  func.func @transform_1(%arg0: i32, %arg1: i32) -> (i32, i32) {
    %c1_i32 = arith.constant 1 : i32
    %0 = arith.muli %arg0, %c1_i32 : i32
    %1 = arith.addi %0, %arg1 : i32
    %c0_i32 = arith.constant 0 : i32
    %2 = arith.minsi %1, %c0_i32 : i32
    %c0_i32_0 = arith.constant 0 : i32
    %c0_i32_1 = arith.constant 0 : i32
    return %2, %c0_i32_0 : i32, i32
  }
  func.func @transform_2(%arg0: i32, %arg1: i32) -> (i32, i32) {
    %c0_i32 = arith.constant 0 : i32
    %c0_i32_0 = arith.constant 0 : i32
    return %c0_i32, %arg0 : i32, i32
  }
}

</mosaic_0001>

<llo_original>
// kernel: tpu_custom_call.1
$region0: #{tpu_custom_call.1}
  #allocation0 [shape = 'u32[]', space=smem, size = 0x4, offset = 0x4, fixed_abs, tag = 'smem constant byte address 0x4 - core index']
  #allocation1 [shape = 'u32[144,128]{1,0:T(1,128)}', space=vmem, size = 0x12000, scoped, tag = 'internal scratch']
  #allocation2 [shape = 'f32[1,256]{1,0:T(1,128)}', space=vmem, size = 0x400, scoped, tag = 'scratch operand']
  %s0 = inlined_call_operand.hbm [shape: f32[1,256], index: 0, kind: input, shape index: {}]
  %s1 = inlined_call_operand.vmem [shape: f32[1,256], index: 1, kind: input, shape index: {}]
  %s2 = inlined_call_operand.hbm [shape: f32[1,256], index: 2, kind: output, shape index: {}]
  %s3 = sld [smem:[#allocation0]]
  $region53: #{tpu_custom_call.1} parent=0
    _
  %s5 = ssub.s32 1, %s3
  %s6 = scalar_select 0, %s5, %s3
  $region1: #{tpu_custom_call.1} parent=0
    #allocation3 [shape = 'u8[2048]{0}', space=vmem, size = 0x800, scoped, tag = 'input window, operand 0']
    #allocation4 [shape = 's32[2]{0}', space=sflag, size = 0x8, scoped, tag = 'scoped memory for tpu_custom_call.1']
    #allocation5 [shape = 's32[2]{0}', space=sflag, size = 0x8, scoped, tag = 'scoped memory for tpu_custom_call.1']
    #allocation6 [shape = 'u8[1024]{0}', space=vmem, size = 0x400, scoped, tag = 'output window, operand 0']
    %7 = vsyncpa [#allocation4], 0
    %s8 = scalar_lea.sflag [#allocation4], 1
    %9 = vsyncpa %s8, 0
    %10 = vsyncpa [#allocation5], 0
    %s11 = scalar_lea.sflag [#allocation5], 1
    %12 = vsyncpa %s11, 0
    loop: start=0, step=1, limit=4
    $region2: #{tpu_custom_call.1} parent=1 // loop_pre_header
      _
    $region3: #{tpu_custom_call.1} parent=1 // loop_header
      %s14 = sphi 0, %s18
      %p15 = scmp.ge.s32.totalorder %s14, 4
      %s21 = sphi 0, %s33
      %s22 = sphi 0, %s29
      %s23 = sphi 0, %s21
      %s24 = sphi 0, %s22
      %s25 = sphi 0, %s23
      %s26 = sphi 0, %s24
      %s42 = sphi 0, %s44
      %s45 = sphi 0, %s42
      %s46 = sphi 0, %s45
      %s62 = sphi 0, %s46
      %s74 = sphi 0, %s76
      %s77 = sphi 0, %s74
      %s78 = sphi 0, %s77
      %s94 = sphi 0, %s78
      %s100 = sphi 0, %s102
      %s103 = sphi 0, %s100
      %s104 = sphi 0, %s103
      %s120 = sphi 0, %s104
    $region4: #{tpu_custom_call.1} parent=1 // loop_header_branch
      %17 = sbr.rel (%p15) target = $region8
    $region5: #{tpu_custom_call.1} parent=1 // loop_body
      %s19 = ssub.s32 %s14, 1
      %s20 = ssub.s32 %s14, 2
      %s27 = sadd.s32 1, %s22
      %p28 = scmp.ge.s32.totalorder %s27, 1
      %s29 = scalar_select %p28, 0, %s27
      %s30 = sadd.s32 1, %s21
      %s31 = scalar_select %p28, %s30, %s21
      %p32 = scmp.ge.s32.totalorder %s31, 2
      %s33 = scalar_select %p32, 0, %s31
      %s34 = sadd.s32 %s21, %s22
      %p35 = scmp.lt.s32.totalorder %s34, 0
      %s36 = scalar_select %p35, %s34, 0
      %s37 = sadd.s32 %s33, %s29
      %p38 = scmp.lt.s32.totalorder %s37, 0
      %s39 = scalar_select %p38, %s37, 0
      %s40 = ssub.s32 %s36, %s39
      %p41 = scmp.eq.s32.totalorder %s40, 0
      %s43 = sadd.s32 %s42, 1
      %s44 = scalar_select %p41, %s42, %s43
      %p47 = pneg %p41
      %p48 = scmp.eq.s32.totalorder %s14, 1
      %p49 = por %p47, %p48
      %p50 = scmp.ne.s32.totalorder %s42, %s45
      %p51 = scmp.eq.s32.totalorder %s14, 0
      %p52 = por %p50, %p51
      %p53 = scmp.ne.s32.totalorder %s42, %s45
      %p54 = scmp.eq.s32.totalorder %s19, 1
      %p55 = por %p53, %p54
      %p56 = scmp.ne.s32.totalorder %s45, %s46
      %p57 = scmp.eq.s32.totalorder %s19, 0
      %p58 = por %p56, %p57
      %p59 = scmp.ne.s32.totalorder %s45, %s46
      %p60 = scmp.eq.s32.totalorder %s20, 1
      %p61 = por %p59, %p60
      %p63 = scmp.ne.s32.totalorder %s46, %s62
      %p64 = scmp.eq.s32.totalorder %s20, 0
      %p65 = por %p63, %p64
      %s66 = sadd.s32 %s21, %s22
      %p67 = scmp.lt.s32.totalorder %s66, 0
      %s68 = scalar_select %p67, %s66, 0
      %s69 = sadd.s32 %s33, %s29
      %p70 = scmp.lt.s32.totalorder %s69, 0
      %s71 = scalar_select %p70, %s69, 0
      %s72 = ssub.s32 %s68, %s71
      %p73 = scmp.eq.s32.totalorder %s72, 0
      %s75 = sadd.s32 %s74, 1
      %s76 = scalar_select %p73, %s74, %s75
      %p79 = pneg %p73
      %p80 = scmp.eq.s32.totalorder %s14, 1
      %p81 = por %p79, %p80
      %p82 = scmp.ne.s32.totalorder %s74, %s77
      %p83 = scmp.eq.s32.totalorder %s14, 0
      %p84 = por %p82, %p83
      %p85 = scmp.ne.s32.totalorder %s74, %s77
      %p86 = scmp.eq.s32.totalorder %s19, 1
      %p87 = por %p85, %p86
      %p88 = scmp.ne.s32.totalorder %s77, %s78
      %p89 = scmp.eq.s32.totalorder %s19, 0
      %p90 = por %p88, %p89
      %p91 = scmp.ne.s32.totalorder %s77, %s78
      %p92 = scmp.eq.s32.totalorder %s20, 1
      %p93 = por %p91, %p92
      %p95 = scmp.ne.s32.totalorder %s78, %s94
      %p96 = scmp.eq.s32.totalorder %s20, 0
      %p97 = por %p95, %p96
      %s98 = ssub.s32 %s21, %s33
      %p99 = scmp.eq.s32.totalorder %s98, 0
      %s101 = sadd.s32 %s100, 1
      %s102 = scalar_select %p99, %s100, %s101
      %p105 = pneg %p99
      %p106 = scmp.eq.s32.totalorder %s14, 1
      %p107 = por %p105, %p106
      %p108 = scmp.ne.s32.totalorder %s100, %s103
      %p109 = scmp.eq.s32.totalorder %s14, 0
      %p110 = por %p108, %p109
      %p111 = scmp.ne.s32.totalorder %s100, %s103
      %p112 = scmp.eq.s32.totalorder %s19, 1
      %p113 = por %p111, %p112
      %p114 = scmp.ne.s32.totalorder %s103, %s104
      %p115 = scmp.eq.s32.totalorder %s19, 0
      %p116 = por %p114, %p115
      %p117 = scmp.ne.s32.totalorder %s103, %s104
      %p118 = scmp.eq.s32.totalorder %s20, 1
      %p119 = por %p117, %p118
      %p121 = scmp.ne.s32.totalorder %s104, %s120
      %p122 = scmp.eq.s32.totalorder %s20, 0
      %p123 = por %p121, %p122
      %p124 = scmp.le.s32.totalorder 1, %s14
      %p125 = scmp.lt.s32.totalorder %s14, 3
      %p126 = pnand %p124, %p125
      %p127 = pneg %p126
      // Predicated region
      $region9: #{tpu_custom_call.1} parent=5 // pred_check
        _
      $region10: #{tpu_custom_call.1} parent=5 // pred_check_branch
        %129 = sbr.rel (%p126) target = $region12
      $region11: #{tpu_custom_call.1} parent=5 // pred_region
        %s130 = ssub.s32 %s14, 1
      $region12: #{tpu_custom_call.1} parent=5 // pred_fallthru
        _
      %p131 = scmp.lt.s32.totalorder %s14, 2
      // Predicated region
      $region13: #{tpu_custom_call.1} parent=5 // pred_check
        %p132 = pneg %p131
      $region14: #{tpu_custom_call.1} parent=5 // pred_check_branch
        %134 = sbr.rel (%p132) target = $region16
      $region15: #{tpu_custom_call.1} parent=5 // pred_region
        // Predicated region
        $region17: #{tpu_custom_call.1} parent=15 // pred_check
          %p135 = pneg %p52
        $region18: #{tpu_custom_call.1} parent=15 // pred_check_branch
          %137 = sbr.rel (%p135) target = $region20
        $region19: #{tpu_custom_call.1} parent=15 // pred_region
          %s138 = sand.u32 %s42, 1
          %s139 = scalar_lea.sflag [#allocation4], %s138
          %s140 = sand.u32 %s42, 1
          %s141 = smul.addr %s140, 2
          %s142 = scalar_lea.vmem [#allocation3], %s141
          %s143 = sadd.s32 %s21, %s22
          %p144 = scmp.lt.s32.totalorder %s143, 0
          %s145 = scalar_select %p144, %s143, 0
          %s147 = ssub.s32 32, 32
          %148 = vsyncadd %s139, %s147
          %s149 = smul.addr %s145, 2
          %s150 = smul.addr %s149, 16
          %s151 = scalar_lea.hbm %s0, %s150
          %s153 = sshll.u32 %s142, 4
          %s154 = int_to_ptr.vmem [resolvable:$true] %s153
          %156 = dma.hbm_to_vmem [thread:$0]  %s151, 32, %s154, %s139
        $region20: #{tpu_custom_call.1} parent=15 // pred_fallthru
          _
        // Predicated region
        $region21: #{tpu_custom_call.1} parent=15 // pred_check
          %p157 = pneg %p84
        $region22: #{tpu_custom_call.1} parent=15 // pred_check_branch
          %159 = sbr.rel (%p157) target = $region24
        $region23: #{tpu_custom_call.1} parent=15 // pred_region
          %s160 = sadd.s32 %s21, %s22
          %p161 = scmp.lt.s32.totalorder %s160, 0
          %s162 = scalar_select %p161, %s160, 0
          %p163 = scmp.lt.s32.totalorder %s162, 0
          %s164 = scalar_select %p163, %s162, 0
          %s165 = smul.addr %s164, 2
          %s166 = scalar_lea.vmem %s1, %s165
          %s167 = sadd.s32 %s21, %s22
          %p168 = scmp.lt.s32.totalorder %s167, 0
          %s169 = scalar_select %p168, %s167, 0
        $region24: #{tpu_custom_call.1} parent=15 // pred_fallthru
          _
      $region16: #{tpu_custom_call.1} parent=5 // pred_fallthru
        _
      %p170 = scmp.le.s32.totalorder 1, %s14
      %p171 = scmp.lt.s32.totalorder %s14, 3
      %p172 = pnand %p170, %p171
      %p173 = pneg %p172
      // Predicated region
      $region25: #{tpu_custom_call.1} parent=5 // pred_check
        _
      $region26: #{tpu_custom_call.1} parent=5 // pred_check_branch
        %175 = sbr.rel (%p172) target = $region28
      $region27: #{tpu_custom_call.1} parent=5 // pred_region
        %s176 = ssub.s32 %s14, 1
        %s177 = sand.u32 %s45, 1
        %s178 = scalar_lea.sflag [#allocation4], %s177
        %s179 = sand.u32 %s45, 1
        %s180 = smul.addr %s179, 2
        %s181 = scalar_lea.vmem [#allocation3], %s180
        // Predicated region
        $region29: #{tpu_custom_call.1} parent=27 // pred_check
          %p182 = pneg %p58
        $region30: #{tpu_custom_call.1} parent=27 // pred_check_branch
          %184 = sbr.rel (%p182) target = $region32
        $region31: #{tpu_custom_call.1} parent=27 // pred_region
          %185 = dma.done %s178, 32
        $region32: #{tpu_custom_call.1} parent=27 // pred_fallthru
          _
        %s186 = sand.u32 %s45, 1
        %s187 = scalar_lea.sflag [#allocation4], %s186
        %s188 = sand.u32 %s45, 1
        %s189 = smul.addr %s188, 2
        %s190 = scalar_lea.vmem [#allocation3], %s189
        %p191 = pneg %p58
        %p192 = pneg %p55
        %s193 = sadd.s32 %s23, %s24
        %p194 = scmp.lt.s32.totalorder %s193, 0
        %s195 = scalar_select %p194, %s193, 0
        %p196 = scmp.lt.s32.totalorder %s195, 0
        %s197 = scalar_select %p196, %s195, 0
        %s198 = smul.addr %s197, 2
        %s199 = scalar_lea.vmem %s1, %s198
        %p200 = pneg %p90
        %p201 = pneg %p87
        %p202 = pneg %p116
        %p203 = pneg %p113
        %s204 = sand.u32 %s103, 1
        %s205 = scalar_lea.sflag [#allocation5], %s204
        %s206 = sand.u32 %s103, 1
        %s207 = scalar_lea.vmem [#allocation6], %s206
        %s208 = sadd.s32 %s23, %s24
        %p209 = scmp.lt.s32.totalorder %s208, 0
        %s210 = scalar_select %p209, %s208, 0
        %s211 = sadd.s32 %s23, %s24
        %p212 = scmp.lt.s32.totalorder %s211, 0
        %s213 = scalar_select %p212, %s211, 0
        %p214 = scmp.lt.s32.totalorder %s213, 0
        %s215 = scalar_select %p214, %s213, 0
        %s216 = smul.addr %s215, 2
        %s217 = scalar_lea.vmem %s1, %s216
        %s218 = sadd.s32 %s23, %s24
        %p219 = scmp.lt.s32.totalorder %s218, 0
        %s220 = scalar_select %p219, %s218, 0
        %p221 = scmp.eq.s32.totalorder %s24, 0
        // Predicated region
        $region33: #{tpu_custom_call.1} parent=27 // pred_check
          %p222 = pneg %p221
        $region34: #{tpu_custom_call.1} parent=27 // pred_check_branch
          %224 = sbr.rel (%p222) target = $region36
        $region35: #{tpu_custom_call.1} parent=27 // pred_region
          %v225 = vlaneseq
          %vm226 = vcmp.ge.s32.totalorder %v225, 0
          %vm227 = vcmp.lt.s32.totalorder %v225, 256
          %vm228 = vmand %vm226, %vm227
          %229 = vst.msk [vmem:[#allocation2] sm:$0x3] %vm228, 0.0
        $region36: #{tpu_custom_call.1} parent=27 // pred_fallthru
          _
        %s230 = sadd.s32 %s23, %s24
        %v231 = vld [vmem:[%s181] sm:$0x3]
        %v232 = vld [vmem:[%s217] sm:$0x3]
        %v233 = vmul.f32 %v231, 2.0
        %v234 = vadd.f32 %v231, %v232
        %v235 = vrcp.pop %v234
        %v236 = vmul.f32 %v233, %v235
        %v237 = vlog2.pop %v236
        %v238 = vmul.f32 %v237, 0.6931472
        %v239 = vmul.f32 %v231, %v238
        %v240 = vsub.f32 2.0, %v236
        %v241 = vlog2.pop %v240
        %v242 = vmul.f32 %v241, 0.6931472
        %v243 = vmul.f32 %v232, %v242
        %v244 = vadd.f32 %v239, %v243
        %v245 = vlaneseq
        %v246 = vshrl.u32 %v245, 7
        %v247 = vstv %s230
        %v248 = vadd.s32 %v247, %v246
        %vm249 = vcmp.lt.s32.totalorder %v248, 1
        %v251 = vlaneseq
        %v252 = vshrl.u32 %v251, 7
        %v253 = vsub.s32 0, %v252
        %v254 = vrot.slane %v244, %v253
        %v255 = vlaneseq
        %v256 = vshrl.u32 %v255, 7
        %v257 = vsub.s32 1, %v256
        %v258 = vrot.slane %v244, %v257
        %v261 = vsel %vm249, %v254, 0.0
        %v262 = vsel %vm249, %v258, 0.0
        %v263 = vld [vmem:[#allocation2] sm:$0x3]
        %v266 = vcombine.low %v261, %v262
        %v268 = vunpack.c.l.s4 1966171168
        %v269 = vunpack.c.0.s8 %v268
        %v270 = vlaneseq
        %v271 = vshrl.u32 %v270, 7
        %v272 = vsub.s32 %v269, %v271
        %v273 = vrot.slane %v266, %v272
        %v275 = vunpack.c.l.s4 1966171168
        %v276 = vunpack.c.0.s8 %v275
        %v277 = vlaneseq
        %v278 = vshrl.u32 %v277, 7
        %v279 = vsub.s32 %v276, %v278
        %v280 = vrot.slane %v273, %v279
        %v282 = vadd.f32 %v263, %v280
        %v283 = vlaneseq
        %vm284 = vcmp.ge.s32.totalorder %v283, 0
        %vm285 = vcmp.lt.s32.totalorder %v283, 256
        %vm286 = vmand %vm284, %vm285
        %287 = vst.msk [vmem:[#allocation2] sm:$0x3] %vm286, %v282
        // Predicated region
        $region37: #{tpu_custom_call.1} parent=27 // pred_check
          %p288 = pneg %p221
        $region38: #{tpu_custom_call.1} parent=27 // pred_check_branch
          %290 = sbr.rel (%p288) target = $region40
        $region39: #{tpu_custom_call.1} parent=27 // pred_region
          %v291 = vld [vmem:[#allocation2] sm:$0x3]
          %v293 = vlaneseq
          %v294 = vshrl.u32 %v293, 7
          %v295 = vsub.s32 0, %v294
          %v296 = vrot.slane %v291, %v295
          %v297 = vlaneseq
          %v298 = vshrl.u32 %v297, 7
          %v299 = vsub.s32 1, %v298
          %v300 = vrot.slane %v291, %v299
          %vm303 = vcmask 1040384
          %v304 = vsel %vm303, %v296, 0.0
          %v305 = vsel %vm303, %v300, 0.0
          %v306 = vadd.f32 %v304, %v305
          %307 = vadd.xlane.f32.xlu0 %v306
          %v308 = vpop.xlane.xlu0 %307
          %v309 = vrot.slane %v308, 4
          %v310 = vadd.f32 %v308, %v309
          %v311 = vrot.slane %v310, 2
          %v312 = vadd.f32 %v310, %v311
          %v313 = vrot.slane %v312, 1
          %v314 = vadd.f32 %v312, %v313
          %s315 = vtos %v314
          %v316 = vstv %s315
          %317 = vst [vmem:[%s207] sm:$0x1] %v316
        $region40: #{tpu_custom_call.1} parent=27 // pred_fallthru
          _
        %s318 = sand.u32 %s103, 1
        %s319 = scalar_lea.sflag [#allocation5], %s318
        %s320 = sand.u32 %s103, 1
        %s321 = scalar_lea.vmem [#allocation6], %s320
        // Predicated region
        $region41: #{tpu_custom_call.1} parent=27 // pred_check
          %p322 = pneg %p113
        $region42: #{tpu_custom_call.1} parent=27 // pred_check_branch
          %324 = sbr.rel (%p322) target = $region44
        $region43: #{tpu_custom_call.1} parent=27 // pred_region
          %s326 = ssub.s32 16, 16
          %327 = vsyncadd %s319, %s326
          %s328 = smul.addr %s23, 16
          %s329 = scalar_lea.hbm %s2, %s328
          %s331 = sshll.u32 %s321, 4
          %s332 = int_to_ptr.vmem [resolvable:$true] %s331
          %334 = dma.vmem_to_hbm [thread:$0]  %s332, 16, %s329, %s319
        $region44: #{tpu_custom_call.1} parent=27 // pred_fallthru
          _
      $region28: #{tpu_custom_call.1} parent=5 // pred_fallthru
        _
      %p335 = scmp.le.s32.totalorder 2, %s14
      // Predicated region
      $region45: #{tpu_custom_call.1} parent=5 // pred_check
        %p336 = pneg %p335
      $region46: #{tpu_custom_call.1} parent=5 // pred_check_branch
        %338 = sbr.rel (%p336) target = $region48
      $region47: #{tpu_custom_call.1} parent=5 // pred_region
        %s339 = ssub.s32 %s14, 2
        // Predicated region
        $region49: #{tpu_custom_call.1} parent=47 // pred_check
          %p340 = pneg %p119
        $region50: #{tpu_custom_call.1} parent=47 // pred_check_branch
          %342 = sbr.rel (%p340) target = $region52
        $region51: #{tpu_custom_call.1} parent=47 // pred_region
          %s343 = sand.u32 %s104, 1
          %s344 = scalar_lea.sflag [#allocation5], %s343
          %s345 = sand.u32 %s104, 1
          %s346 = scalar_lea.vmem [#allocation6], %s345
          %347 = dma.done %s344, 16
        $region52: #{tpu_custom_call.1} parent=47 // pred_fallthru
          _
      $region48: #{tpu_custom_call.1} parent=5 // pred_fallthru
        _
    $region6: #{tpu_custom_call.1} parent=1 // loop_footer
      %s18 = sadd.s32 1, %s14
    $region7: #{tpu_custom_call.1} parent=1 // loop_footer_branch
      %13 = sbr.rel target = $region3
    $region8: #{tpu_custom_call.1} parent=1 // loop_exit
      _
    %348 = vsyncpa [#allocation4], 1
    %s349 = scalar_lea.sflag [#allocation4], 1
    %350 = vsyncpa %s349, 1
    %351 = vsyncpa [#allocation5], 1
    %s352 = scalar_lea.sflag [#allocation5], 1
    %353 = vsyncpa %s352, 1

</llo_original>
